<compile_context>
chip_gen: v5e
topology: v5e:2x2
jax: 0.10.0
libtpu: 0.0.40
codegen_flags: <defaults>
</compile_context>

<pallas_src>
import jax
import jax.numpy as jnp
from jax.experimental import pallas as pl
from jax.experimental.pallas import tpu as pltpu


_VMEM_TARGET = 40 * 1024 * 1024   # v7x-safe scoped-VMEM budget


def _round_up(x, m):
    return (x + m - 1) // m * m


def mlp_kernel(x_ref, w1t_ref, b1_ref, w2t_ref, b2_ref, o_ref):
    # x: (TB, Cp)   w1t: (Cp, Mp)   b1: (1, Mp) f32
    # w2t: (Mp, Cp) b2: (1, Cp) f32 o: (TB, Cp)
    x = x_ref[...].astype(w1t_ref.dtype)                 # free in-kernel cast
    h = jnp.dot(x, w1t_ref[...], preferred_element_type=jnp.float32)
    h = jnp.maximum(h + b1_ref[...], 0.0)                # f32 epilogue on VPU
    y = jnp.dot(h.astype(w2t_ref.dtype), w2t_ref[...],
                preferred_element_type=jnp.float32) + b2_ref[...]
    o_ref[...] = y.astype(o_ref.dtype)                   # single lane-dense store


def prepare_mlp_params(w1, b1, w2, b2, *, compute_dtype=jnp.bfloat16):
    """One-time parameter prep (transpose + lane padding), outside the hot path.

    nn.Linear stores (out, in); we pre-transpose to (in, out) and zero-pad C
    and mid up to multiples of 128 lanes.  Weights default to bf16 (native MXU
    dtype on v5e/v6e/v7x, halves weight DMA bytes); biases stay f32.  Padded
    weight rows/cols and bias entries are 0, so padded output channels are
    exactly 0 and get sliced off by the wrapper.
    """
    mid, C = w1.shape
    assert w2.shape == (C, mid)
    Cp = _round_up(C, 128)
    Mp = _round_up(mid, 128)
    dt = jnp.dtype(compute_dtype)
    w1t = jnp.zeros((Cp, Mp), dt).at[:C, :mid].set(w1.T.astype(dt))
    w2t = jnp.zeros((Mp, Cp), dt).at[:mid, :C].set(w2.T.astype(dt))
    b1p = jnp.zeros((1, Mp), jnp.float32).at[0, :mid].set(b1.astype(jnp.float32))
    b2p = jnp.zeros((1, Cp), jnp.float32).at[0, :C].set(b2.astype(jnp.float32))
    return w1t, b1p, w2t, b2p


def _build_mlp_call(n_rows, Cp, Mp, TB, out_dtype, vmem_bytes,
                    use_pipeline_modes, stream_depth):
    def pinned(shape):
        # Constant blocks: request single buffering (they never change).
        if use_pipeline_modes:
            return pl.BlockSpec(shape, lambda i: (0, 0),
                                pipeline_mode=pl.Buffered(1))
        return pl.BlockSpec(shape, lambda i: (0, 0))

    def streamed(shape):
        # Optionally deeper prefetch of the x / out tiles (useful on v5e/v6e).
        if use_pipeline_modes and stream_depth is not None:
            return pl.BlockSpec(shape, lambda i: (i, 0),
                                pipeline_mode=pl.Buffered(stream_depth))
        return pl.BlockSpec(shape, lambda i: (i, 0))

    return pl.pallas_call(
        mlp_kernel,
        out_shape=jax.ShapeDtypeStruct((n_rows, Cp), out_dtype),
        grid_spec=pltpu.PrefetchScalarGridSpec(
            num_scalar_prefetch=0,
            grid=(pl.cdiv(n_rows, TB),),
            in_specs=[
                streamed((TB, Cp)),        # x: streamed over the batch axis
                pinned((Cp, Mp)),          # w1t: VMEM resident
                pinned((1, Mp)),           # b1
                pinned((Mp, Cp)),          # w2t: VMEM resident
                pinned((1, Cp)),           # b2
            ],
            out_specs=streamed((TB, Cp)),
        ),
        compiler_params=pltpu.CompilerParams(
            dimension_semantics=("parallel",),   # batch axis -> both TCs on v7x
            vmem_limit_bytes=vmem_bytes,
        ),
    )


def mlp_forward(x_nchw, w1t, b1p, w2t, b2p, *, block_b=256, stream_depth=None):
    """Forward pass of the CBAM MLP.

    x_nchw: (B, C, 1, 1) (or anything flattening to (B, C), H=W=1 expected).
    Weights must come from `prepare_mlp_params`.  Stack CBAM's avg-pool and
    max-pool branches along B and call once (weights are shared and stay VMEM
    resident).  `stream_depth=3` gives deeper x/out prefetch on v5e/v6e.
    """
    B = x_nchw.shape[0]
    x2d = x_nchw.reshape(B, -1)
    C = x2d.shape[1]
    Cp, Mp = w1t.shape
    assert w2t.shape == (Mp, Cp)
    assert C <= Cp, "flattened width must match fc1 in_features (H=W=1 expected)"

    compute_dtype = w1t.dtype
    out_dtype = x2d.dtype

    # Only materialize a padded activation slab when the layout needs it;
    # lane-aligned shapes stream straight from the caller's buffer (saves a
    # full extra HBM pass on this memory-bound kernel).
    need_pad = (B % 8 != 0) or (C != Cp)
    if need_pad:
        n_rows = _round_up(B, 8)
        x_in = (jnp.zeros((n_rows, Cp), compute_dtype)
                .at[:B, :C].set(x2d.astype(compute_dtype)))
    else:
        n_rows = B
        x_in = x2d                      # dtype cast happens inside the kernel

    x_itemsize = jnp.dtype(x_in.dtype).itemsize
    o_itemsize = jnp.dtype(out_dtype).itemsize
    w_itemsize = jnp.dtype(compute_dtype).itemsize
    w_bytes = 2 * Cp * Mp * w_itemsize           # both weight matrices
    b_bytes = (Mp + Cp) * 4
    sbuf = stream_depth if stream_depth else 2   # x/out buffer count

    # Batch tile: multiple of the 8-sublane height, as big as block_b / VMEM
    # allow (bigger tiles amortize the ~0.35us per-grid-step overhead).
    per_row = sbuf * Cp * (x_itemsize + o_itemsize)
    avail = _VMEM_TARGET - 2 * (w_bytes + b_bytes)   # worst case: 2 weight bufs
    tb_cap = max(8, (avail // per_row) // 8 * 8)
    TB = max(8, min(_round_up(block_b, 8), n_rows, tb_cap))

    # Keep >= 2 grid steps for non-trivial B so ("parallel",) can split the
    # batch across v7x's two TensorCores.
    if pl.cdiv(n_rows, TB) < 2 and n_rows >= 16:
        TB = max(8, _round_up(pl.cdiv(n_rows, 2), 8))

    vmem_est = (sbuf * TB * Cp * (x_itemsize + o_itemsize)
                + 2 * (w_bytes + b_bytes))
    vmem_bytes = int(min(max(vmem_est + (2 << 20), 4 << 20), _VMEM_TARGET))

    args = (x_in, w1t, b1p, w2t, b2p)
    try:
        out = _build_mlp_call(n_rows, Cp, Mp, TB, out_dtype, vmem_bytes,
                              use_pipeline_modes=True,
                              stream_depth=stream_depth)(*args)
    except Exception:
        # Fallback for JAX versions without BlockSpec pipeline_mode support:
        # default double buffering everywhere (still correct, slightly more VMEM).
        out = _build_mlp_call(n_rows, Cp, Mp, TB, out_dtype, vmem_bytes,
                              use_pipeline_modes=False,
                              stream_depth=None)(*args)

    if n_rows != B or Cp != C:
        out = out[:B, :C]
    return out


def reference_mlp(x_nchw, w1, b1, w2, b2):
    x = x_nchw.reshape(x_nchw.shape[0], -1).astype(jnp.float32)
    h = jnp.maximum(x @ w1.T + b1, 0.0)
    return h @ w2.T + b2


if __name__ == "__main__":
    def make_case(key, B, channels, reduction_ratio=16):
        mid = max(1, channels // reduction_ratio)
        kx, k1, k2, k3, k4 = jax.random.split(key, 5)
        x = jax.random.normal(kx, (B, channels, 1, 1), dtype=jnp.float32)
        # nn.Linear shapes: (out, in) / (out,)
        w1 = jax.random.normal(k1, (mid, channels), dtype=jnp.float32) * 0.1
        b1 = jax.random.normal(k2, (mid,), dtype=jnp.float32) * 0.1
        w2 = jax.random.normal(k3, (channels, mid), dtype=jnp.float32) * 0.1
        b2 = jax.random.normal(k4, (channels,), dtype=jnp.float32) * 0.1
        return x, (w1, b1, w2, b2)

    key = jax.random.PRNGKey(0)
    k_a, k_b = jax.random.split(key)

    # Case 1: canonical small CBAM shape (B=2, C=64, mid=4) -> needs lane
    # padding.  f32 compute path, tight tolerance.
    x, params = make_case(k_a, B=2, channels=64)
    w1t, b1p, w2t, b2p = prepare_mlp_params(*params, compute_dtype=jnp.float32)
    y = jax.block_until_ready(mlp_forward(x, w1t, b1p, w2t, b2p))
    y_ref = reference_mlp(x, *params)
    assert y.shape == y_ref.shape, (y.shape, y_ref.shape)
    assert jnp.allclose(y, y_ref, atol=1e-5, rtol=1e-5), "f32 padded path mismatch"

    # Case 2: lane-aligned shape (B=16, C=128, mid=8) -> no wrapper pad or
    # slice, bf16 streamed weights (default), f32 accumulation / epilogue.
    x, params = make_case(k_b, B=16, channels=128)
    w1t, b1p, w2t, b2p = prepare_mlp_params(*params)          # bf16 default
    y = jax.block_until_ready(mlp_forward(x, w1t, b1p, w2t, b2p))
    y_ref = reference_mlp(x, *params)
    assert y.shape == y_ref.shape, (y.shape, y_ref.shape)
    assert jnp.allclose(y, y_ref, atol=3e-2, rtol=3e-2), "bf16 aligned path mismatch"

    print("KERNEL_OK")
</pallas_src>

<mosaic_0001>
module attributes {stable_mosaic.version = 11 : i64} {
  func.func @mlp_kernel(%arg0: i32, %arg1: memref<8x128xf32, #tpu.memory_space<vmem>>, %arg2: memref<128x128xf32, #tpu.memory_space<vmem>>, %arg3: memref<1x128xf32, #tpu.memory_space<vmem>>, %arg4: memref<128x128xf32, #tpu.memory_space<vmem>>, %arg5: memref<1x128xf32, #tpu.memory_space<vmem>>, %arg6: memref<8x128xf32, #tpu.memory_space<vmem>>) attributes {dimension_semantics = [#tpu.dimension_semantics<parallel>], iteration_bounds = array<i64: 1>, scalar_prefetch = 0 : i64, scratch_operands = 0 : i64, tpu.core_type = #tpu.core_type<tc>, window_params = [{transform_indices = @transform_0, window_bounds = array<i64: 8, 128>}, {pipeline_mode = #tpu.pipeline_mode<synchronous>, transform_indices = @transform_1, window_bounds = array<i64: 128, 128>}, {pipeline_mode = #tpu.pipeline_mode<synchronous>, transform_indices = @transform_2, window_bounds = array<i64: 1, 128>}, {pipeline_mode = #tpu.pipeline_mode<synchronous>, transform_indices = @transform_3, window_bounds = array<i64: 128, 128>}, {pipeline_mode = #tpu.pipeline_mode<synchronous>, transform_indices = @transform_4, window_bounds = array<i64: 1, 128>}, {transform_indices = @transform_5, window_bounds = array<i64: 8, 128>}]} {
    %c0 = arith.constant 0 : index
    %c0_0 = arith.constant 0 : index
    %0 = vector.load %arg1[%c0, %c0_0] : memref<8x128xf32, #tpu.memory_space<vmem>>, vector<8x128xf32>
    %c0_1 = arith.constant 0 : index
    %c0_2 = arith.constant 0 : index
    %1 = vector.load %arg2[%c0_1, %c0_2] : memref<128x128xf32, #tpu.memory_space<vmem>>, vector<128x128xf32>
    %cst = arith.constant dense<0.000000e+00> : vector<8x128xf32>
    %2 = tpu.matmul %0, %1, %cst {dimension_numbers = #tpu.dot_dimension_numbers<[1], [0], [0], [1], [0, 0, 1, 1], [], []>} : vector<8x128xf32>, vector<128x128xf32>, vector<8x128xf32> -> vector<8x128xf32>
    %c0_3 = arith.constant 0 : index
    %c0_4 = arith.constant 0 : index
    %3 = vector.load %arg3[%c0_3, %c0_4] : memref<1x128xf32, #tpu.memory_space<vmem>>, vector<1x128xf32>
    %4 = vector.broadcast %3 : vector<1x128xf32> to vector<8x128xf32>
    %5 = arith.addf %2, %4 : vector<8x128xf32>
    %cst_5 = arith.constant 0.000000e+00 : f32
    %6 = vector.broadcast %cst_5 : f32 to vector<8x128xf32>
    %7 = arith.maximumf %5, %6 : vector<8x128xf32>
    %c0_6 = arith.constant 0 : index
    %c0_7 = arith.constant 0 : index
    %8 = vector.load %arg4[%c0_6, %c0_7] : memref<128x128xf32, #tpu.memory_space<vmem>>, vector<128x128xf32>
    %cst_8 = arith.constant dense<0.000000e+00> : vector<8x128xf32>
    %9 = tpu.matmul %7, %8, %cst_8 {dimension_numbers = #tpu.dot_dimension_numbers<[1], [0], [0], [1], [0, 0, 1, 1], [], []>} : vector<8x128xf32>, vector<128x128xf32>, vector<8x128xf32> -> vector<8x128xf32>
    %c0_9 = arith.constant 0 : index
    %c0_10 = arith.constant 0 : index
    %10 = vector.load %arg5[%c0_9, %c0_10] : memref<1x128xf32, #tpu.memory_space<vmem>>, vector<1x128xf32>
    %11 = vector.broadcast %10 : vector<1x128xf32> to vector<8x128xf32>
    %12 = arith.addf %9, %11 : vector<8x128xf32>
    %c0_11 = arith.constant 0 : index
    %c0_12 = arith.constant 0 : index
    %13 = vector.load %arg6[%c0_11, %c0_12] : memref<8x128xf32, #tpu.memory_space<vmem>>, vector<8x128xf32>
    tpu.vector_store %arg6[%c0_11, %c0_12], %12 {strides = array<i32>} : memref<8x128xf32, #tpu.memory_space<vmem>>, vector<8x128xf32>,
    return
  }
  func.func @transform_0(%arg0: i32) -> (i32, i32) {
    %c0_i32 = arith.constant 0 : i32
    %c0_i32_0 = arith.constant 0 : i32
    return %arg0, %c0_i32 : i32, i32
  }
  func.func @transform_1(%arg0: i32) -> (i32, i32) {
    %c0_i32 = arith.constant 0 : i32
    %c0_i32_0 = arith.constant 0 : i32
    %c0_i32_1 = arith.constant 0 : i32
    return %c0_i32, %c0_i32_0 : i32, i32
  }
  func.func @transform_2(%arg0: i32) -> (i32, i32) {
    %c0_i32 = arith.constant 0 : i32
    %c0_i32_0 = arith.constant 0 : i32
    %c0_i32_1 = arith.constant 0 : i32
    return %c0_i32, %c0_i32_0 : i32, i32
  }
  func.func @transform_3(%arg0: i32) -> (i32, i32) {
    %c0_i32 = arith.constant 0 : i32
    %c0_i32_0 = arith.constant 0 : i32
    %c0_i32_1 = arith.constant 0 : i32
    return %c0_i32, %c0_i32_0 : i32, i32
  }
  func.func @transform_4(%arg0: i32) -> (i32, i32) {
    %c0_i32 = arith.constant 0 : i32
    %c0_i32_0 = arith.constant 0 : i32
    %c0_i32_1 = arith.constant 0 : i32
    return %c0_i32, %c0_i32_0 : i32, i32
  }
  func.func @transform_5(%arg0: i32) -> (i32, i32) {
    %c0_i32 = arith.constant 0 : i32
    %c0_i32_0 = arith.constant 0 : i32
    return %arg0, %c0_i32 : i32, i32
  }
}

module attributes {stable_mosaic.version = 11 : i64} {
  func.func @mlp_kernel(%arg0: i32, %arg1: memref<8x128xf32, #tpu.memory_space<vmem>>, %arg2: memref<128x128xf32, #tpu.memory_space<vmem>>, %arg3: memref<1x128xf32, #tpu.memory_space<vmem>>, %arg4: memref<128x128xf32, #tpu.memory_space<vmem>>, %arg5: memref<1x128xf32, #tpu.memory_space<vmem>>, %arg6: memref<8x128xf32, #tpu.memory_space<vmem>>) attributes {dimension_semantics = [#tpu.dimension_semantics<parallel>], iteration_bounds = array<i64: 1>, scalar_prefetch = 0 : i64, scratch_operands = 0 : i64, tpu.core_type = #tpu.core_type<tc>, window_params = [{transform_indices = @transform_0, window_bounds = array<i64: 8, 128>}, {pipeline_mode = #tpu.pipeline_mode<synchronous>, transform_indices = @transform_1, window_bounds = array<i64: 128, 128>}, {pipeline_mode = #tpu.pipeline_mode<synchronous>, transform_indices = @transform_2, window_bounds = array<i64: 1, 128>}, {pipeline_mode = #tpu.pipeline_mode<synchronous>, transform_indices = @transform_3, window_bounds = array<i64: 128, 128>}, {pipeline_mode = #tpu.pipeline_mode<synchronous>, transform_indices = @transform_4, window_bounds = array<i64: 1, 128>}, {transform_indices = @transform_5, window_bounds = array<i64: 8, 128>}]} {
    %c0 = arith.constant 0 : index
    %c0_0 = arith.constant 0 : index
    %0 = vector.load %arg1[%c0, %c0_0] : memref<8x128xf32, #tpu.memory_space<vmem>>, vector<8x128xf32>
    %c0_1 = arith.constant 0 : index
    %c0_2 = arith.constant 0 : index
    %1 = vector.load %arg2[%c0_1, %c0_2] : memref<128x128xf32, #tpu.memory_space<vmem>>, vector<128x128xf32>
    %cst = arith.constant dense<0.000000e+00> : vector<8x128xf32>
    %2 = tpu.matmul %0, %1, %cst {dimension_numbers = #tpu.dot_dimension_numbers<[1], [0], [0], [1], [0, 0, 1, 1], [], []>} : vector<8x128xf32>, vector<128x128xf32>, vector<8x128xf32> -> vector<8x128xf32>
    %c0_3 = arith.constant 0 : index
    %c0_4 = arith.constant 0 : index
    %3 = vector.load %arg3[%c0_3, %c0_4] : memref<1x128xf32, #tpu.memory_space<vmem>>, vector<1x128xf32>
    %4 = vector.broadcast %3 : vector<1x128xf32> to vector<8x128xf32>
    %5 = arith.addf %2, %4 : vector<8x128xf32>
    %cst_5 = arith.constant 0.000000e+00 : f32
    %6 = vector.broadcast %cst_5 : f32 to vector<8x128xf32>
    %7 = arith.maximumf %5, %6 : vector<8x128xf32>
    %c0_6 = arith.constant 0 : index
    %c0_7 = arith.constant 0 : index
    %8 = vector.load %arg4[%c0_6, %c0_7] : memref<128x128xf32, #tpu.memory_space<vmem>>, vector<128x128xf32>
    %cst_8 = arith.constant dense<0.000000e+00> : vector<8x128xf32>
    %9 = tpu.matmul %7, %8, %cst_8 {dimension_numbers = #tpu.dot_dimension_numbers<[1], [0], [0], [1], [0, 0, 1, 1], [], []>} : vector<8x128xf32>, vector<128x128xf32>, vector<8x128xf32> -> vector<8x128xf32>
    %c0_9 = arith.constant 0 : index
    %c0_10 = arith.constant 0 : index
    %10 = vector.load %arg5[%c0_9, %c0_10] : memref<1x128xf32, #tpu.memory_space<vmem>>, vector<1x128xf32>
    %11 = vector.broadcast %10 : vector<1x128xf32> to vector<8x128xf32>
    %12 = arith.addf %9, %11 : vector<8x128xf32>
    %c0_11 = arith.constant 0 : index
    %c0_12 = arith.constant 0 : index
    %13 = vector.load %arg6[%c0_11, %c0_12] : memref<8x128xf32, #tpu.memory_space<vmem>>, vector<8x128xf32>
    tpu.vector_store %arg6[%c0_11, %c0_12], %12 {strides = array<i32>} : memref<8x128xf32, #tpu.memory_space<vmem>>, vector<8x128xf32>,
    return
  }
  func.func @transform_0(%arg0: i32) -> (i32, i32) {
    %c0_i32 = arith.constant 0 : i32
    %c0_i32_0 = arith.constant 0 : i32
    return %arg0, %c0_i32 : i32, i32
  }
  func.func @transform_1(%arg0: i32) -> (i32, i32) {
    %c0_i32 = arith.constant 0 : i32
    %c0_i32_0 = arith.constant 0 : i32
    %c0_i32_1 = arith.constant 0 : i32
    return %c0_i32, %c0_i32_0 : i32, i32
  }
  func.func @transform_2(%arg0: i32) -> (i32, i32) {
    %c0_i32 = arith.constant 0 : i32
    %c0_i32_0 = arith.constant 0 : i32
    %c0_i32_1 = arith.constant 0 : i32
    return %c0_i32, %c0_i32_0 : i32, i32
  }
  func.func @transform_3(%arg0: i32) -> (i32, i32) {
    %c0_i32 = arith.constant 0 : i32
    %c0_i32_0 = arith.constant 0 : i32
    %c0_i32_1 = arith.constant 0 : i32
    return %c0_i32, %c0_i32_0 : i32, i32
  }
  func.func @transform_4(%arg0: i32) -> (i32, i32) {
    %c0_i32 = arith.constant 0 : i32
    %c0_i32_0 = arith.constant 0 : i32
    %c0_i32_1 = arith.constant 0 : i32
    return %c0_i32, %c0_i32_0 : i32, i32
  }
  func.func @transform_5(%arg0: i32) -> (i32, i32) {
    %c0_i32 = arith.constant 0 : i32
    %c0_i32_0 = arith.constant 0 : i32
    return %arg0, %c0_i32 : i32, i32
  }
}

</mosaic_0001>

<llo_original>
// kernel: tpu_custom_call.1
$region0: #{tpu_custom_call.1}
  #allocation0 [shape = 'u32[]', space=smem, size = 0x4, offset = 0x4, fixed_abs, tag = 'smem constant byte address 0x4 - core index']
  #allocation1 [shape = 'u32[72,128]{1,0:T(1,128)}', space=vmem, size = 0x9000, scoped, tag = 'internal scratch']
  %s0 = inlined_call_operand.hbm [shape: f32[8,128], index: 0, kind: input, shape index: {}]
  %s1 = inlined_call_operand.hbm [shape: f32[128,128], index: 1, kind: input, shape index: {}]
  %s2 = inlined_call_operand.vmem [shape: f32[1,128], index: 2, kind: input, shape index: {}]
  %s3 = inlined_call_operand.hbm [shape: f32[128,128], index: 3, kind: input, shape index: {}]
  %s4 = inlined_call_operand.vmem [shape: f32[1,128], index: 4, kind: input, shape index: {}]
  %s5 = inlined_call_operand.hbm [shape: f32[8,128], index: 5, kind: output, shape index: {}]
  %s6 = sld [smem:[#allocation0]]
  $region42: #{tpu_custom_call.1} parent=0
    _
  %s8 = ssub.s32 1, %s6
  %s9 = scalar_select 0, %s8, %s6
  $region1: #{tpu_custom_call.1} parent=0
    #allocation2 [shape = 'u8[4096]{0}', space=vmem, size = 0x1000, scoped, tag = 'input window, operand 0, single buffered']
    #allocation3 [shape = 's32[1]{0}', space=sflag, size = 0x4, scoped, tag = 'scoped memory for tpu_custom_call.1']
    #allocation4 [shape = 's32[1]{0}', space=sflag, size = 0x4, scoped, tag = 'scoped memory for tpu_custom_call.1']
    #allocation5 [shape = 'u8[65536]{0}', space=vmem, size = 0x10000, scoped, tag = 'input window, operand 1, single buffered']
    #allocation6 [shape = 's32[1]{0}', space=sflag, size = 0x4, scoped, tag = 'scoped memory for tpu_custom_call.1']
    #allocation7 [shape = 'u8[65536]{0}', space=vmem, size = 0x10000, scoped, tag = 'input window, operand 3, single buffered']
    #allocation8 [shape = 'u8[4096]{0}', space=vmem, size = 0x1000, scoped, tag = 'output window, operand 0, single buffered']
    %10 = vsyncpa [#allocation3], 0
    %11 = vsyncpa [#allocation6], 0
    %12 = vsyncpa [#allocation4], 0
    // Predicated region
    $region2: #{tpu_custom_call.1} parent=1 // pred_check
      _
    $region3: #{tpu_custom_call.1} parent=1 // pred_check_branch
      %14 = sbr.rel (0) target = $region5
    $region4: #{tpu_custom_call.1} parent=1 // pred_region
      %16 = vsyncadd [#allocation3], 0
      %s18 = sshll.u32 %s0, 4
      %s19 = int_to_ptr.hbm [resolvable:$true] %s18
      %s20 = sshll.u32 [#allocation2], 4
      %s21 = int_to_ptr.vmem [resolvable:$true] %s20
      %23 = dma.hbm_to_vmem [thread:$0]  %s19, 128, %s21, [#allocation3]
    $region5: #{tpu_custom_call.1} parent=1 // pred_fallthru
      _
    // Predicated region
    $region6: #{tpu_custom_call.1} parent=1 // pred_check
      _
    $region7: #{tpu_custom_call.1} parent=1 // pred_check_branch
      %25 = sbr.rel (0) target = $region9
    $region8: #{tpu_custom_call.1} parent=1 // pred_region
      %27 = vsyncadd [#allocation6], 0
      %s28 = sshll.u32 %s1, 4
      %s29 = int_to_ptr.hbm [resolvable:$true] %s28
      %s30 = sshll.u32 [#allocation5], 4
      %s31 = int_to_ptr.vmem [resolvable:$true] %s30
      %36 = dma.hbm_to_vmem [thread:$0]  %s29, 2048, %s31, [#allocation6], 128, 128, 8
    $region9: #{tpu_custom_call.1} parent=1 // pred_fallthru
      _
    // Predicated region
    $region10: #{tpu_custom_call.1} parent=1 // pred_check
      _
    $region11: #{tpu_custom_call.1} parent=1 // pred_check_branch
      %38 = sbr.rel (0) target = $region13
    $region12: #{tpu_custom_call.1} parent=1 // pred_region
      _
    $region13: #{tpu_custom_call.1} parent=1 // pred_fallthru
      _
    // Predicated region
    $region14: #{tpu_custom_call.1} parent=1 // pred_check
      _
    $region15: #{tpu_custom_call.1} parent=1 // pred_check_branch
      %40 = sbr.rel (0) target = $region17
    $region16: #{tpu_custom_call.1} parent=1 // pred_region
      %42 = vsyncadd [#allocation6], 0
      %s43 = sshll.u32 %s3, 4
      %s44 = int_to_ptr.hbm [resolvable:$true] %s43
      %s45 = sshll.u32 [#allocation7], 4
      %s46 = int_to_ptr.vmem [resolvable:$true] %s45
      %51 = dma.hbm_to_vmem [thread:$0]  %s44, 2048, %s46, [#allocation6], 128, 128, 8
    $region17: #{tpu_custom_call.1} parent=1 // pred_fallthru
      _
    // Predicated region
    $region18: #{tpu_custom_call.1} parent=1 // pred_check
      _
    $region19: #{tpu_custom_call.1} parent=1 // pred_check_branch
      %53 = sbr.rel (0) target = $region21
    $region20: #{tpu_custom_call.1} parent=1 // pred_region
      _
    $region21: #{tpu_custom_call.1} parent=1 // pred_fallthru
      _
    // Predicated region
    $region22: #{tpu_custom_call.1} parent=1 // pred_check
      _
    $region23: #{tpu_custom_call.1} parent=1 // pred_check_branch
      %55 = sbr.rel (0) target = $region25
    $region24: #{tpu_custom_call.1} parent=1 // pred_region
      %57 = dma.done [#allocation3], 128
    $region25: #{tpu_custom_call.1} parent=1 // pred_fallthru
      _
    // Predicated region
    $region26: #{tpu_custom_call.1} parent=1 // pred_check
      _
    $region27: #{tpu_custom_call.1} parent=1 // pred_check_branch
      %59 = sbr.rel (0) target = $region29
    $region28: #{tpu_custom_call.1} parent=1 // pred_region
      %61 = dma.done [#allocation6], 2048
    $region29: #{tpu_custom_call.1} parent=1 // pred_fallthru
      _
    // Predicated region
    $region30: #{tpu_custom_call.1} parent=1 // pred_check
      _
    $region31: #{tpu_custom_call.1} parent=1 // pred_check_branch
      %63 = sbr.rel (0) target = $region33
    $region32: #{tpu_custom_call.1} parent=1 // pred_region
      %65 = dma.done [#allocation6], 2048
    $region33: #{tpu_custom_call.1} parent=1 // pred_fallthru
      _
    %v66 = vld [vmem:[#allocation2] sm:$0xff]
    %v67 = vld [vmem:[#allocation5] sm:$0xff]
    %v68 = vld [vmem:[#allocation5 + $0x8] sm:$0xff]
    %v69 = vld [vmem:[#allocation5 + $0x10] sm:$0xff]
    %v70 = vld [vmem:[#allocation5 + $0x18] sm:$0xff]
    %v71 = vld [vmem:[#allocation5 + $0x20] sm:$0xff]
    %v72 = vld [vmem:[#allocation5 + $0x28] sm:$0xff]
    %v73 = vld [vmem:[#allocation5 + $0x30] sm:$0xff]
    %v74 = vld [vmem:[#allocation5 + $0x38] sm:$0xff]
    %v75 = vld [vmem:[#allocation5 + $0x40] sm:$0xff]
    %v76 = vld [vmem:[#allocation5 + $0x48] sm:$0xff]
    %v77 = vld [vmem:[#allocation5 + $0x50] sm:$0xff]
    %v78 = vld [vmem:[#allocation5 + $0x58] sm:$0xff]
    %v79 = vld [vmem:[#allocation5 + $0x60] sm:$0xff]
    %v80 = vld [vmem:[#allocation5 + $0x68] sm:$0xff]
    %v81 = vld [vmem:[#allocation5 + $0x70] sm:$0xff]
    %v82 = vld [vmem:[#allocation5 + $0x78] sm:$0xff]
    %v83 = vld [vmem:[%s2] sm:$0x1]
    %v85 = vperm.slane %v83, 0
    %87 = vmatpush.msra.mxu0 %v82
    %88 = vmatpush.msra.mxu0 %v81
    %89 = vmatpush.msra.mxu0 %v80
    %90 = vmatpush.msra.mxu0 %v79
    %91 = vmatpush.msra.mxu0 %v78
    %92 = vmatpush.msra.mxu0 %v77
    %93 = vmatpush.msra.mxu0 %v76
    %94 = vmatpush.msra.mxu0 %v75
    %95 = vmatpush.msra.mxu0 %v74
    %96 = vmatpush.msra.mxu0 %v73
    %97 = vmatpush.msra.mxu0 %v72
    %98 = vmatpush.msra.mxu0 %v71
    %99 = vmatpush.msra.mxu0 %v70
    %100 = vmatpush.msra.mxu0 %v69
    %101 = vmatpush.msra.mxu0 %v68
    %102 = vmatpush.msra.mxu0 %v67
    %103 = vmatmul.f32.gmra.mxu0 %v66
    %v104 = vpop.f32.mrf.mxu0
    %v105 = vadd.f32 %v85, %v104
    %106 = vdwg.mxu0
    %v107 = vmax.f32 %v105, 0.0
    %v108 = vld [vmem:[#allocation7] sm:$0xff]
    %v109 = vld [vmem:[#allocation7 + $0x8] sm:$0xff]
    %v110 = vld [vmem:[#allocation7 + $0x10] sm:$0xff]
    %v111 = vld [vmem:[#allocation7 + $0x18] sm:$0xff]
    %v112 = vld [vmem:[#allocation7 + $0x20] sm:$0xff]
    %v113 = vld [vmem:[#allocation7 + $0x28] sm:$0xff]
    %v114 = vld [vmem:[#allocation7 + $0x30] sm:$0xff]
    %v115 = vld [vmem:[#allocation7 + $0x38] sm:$0xff]
    %v116 = vld [vmem:[#allocation7 + $0x40] sm:$0xff]
    %v117 = vld [vmem:[#allocation7 + $0x48] sm:$0xff]
    %v118 = vld [vmem:[#allocation7 + $0x50] sm:$0xff]
    %v119 = vld [vmem:[#allocation7 + $0x58] sm:$0xff]
    %v120 = vld [vmem:[#allocation7 + $0x60] sm:$0xff]
    %v121 = vld [vmem:[#allocation7 + $0x68] sm:$0xff]
    %v122 = vld [vmem:[#allocation7 + $0x70] sm:$0xff]
    %v123 = vld [vmem:[#allocation7 + $0x78] sm:$0xff]
    %v124 = vld [vmem:[%s4] sm:$0x1]
    %v126 = vperm.slane %v124, 0
    %128 = vmatpush.msra.mxu0 %v123
    %129 = vmatpush.msra.mxu0 %v122
    %130 = vmatpush.msra.mxu0 %v121
    %131 = vmatpush.msra.mxu0 %v120
    %132 = vmatpush.msra.mxu0 %v119
    %133 = vmatpush.msra.mxu0 %v118
    %134 = vmatpush.msra.mxu0 %v117
    %135 = vmatpush.msra.mxu0 %v116
    %136 = vmatpush.msra.mxu0 %v115
    %137 = vmatpush.msra.mxu0 %v114
    %138 = vmatpush.msra.mxu0 %v113
    %139 = vmatpush.msra.mxu0 %v112
    %140 = vmatpush.msra.mxu0 %v111
    %141 = vmatpush.msra.mxu0 %v110
    %142 = vmatpush.msra.mxu0 %v109
    %143 = vmatpush.msra.mxu0 %v108
    %144 = vmatmul.f32.gmra.mxu0 %v107
    %v145 = vpop.f32.mrf.mxu0
    %v146 = vadd.f32 %v126, %v145
    %147 = vdwg.mxu0
    %148 = vst [vmem:[#allocation8] sm:$0xff] %v146
    // Predicated region
    $region34: #{tpu_custom_call.1} parent=1 // pred_check
      _
    $region35: #{tpu_custom_call.1} parent=1 // pred_check_branch
      %150 = sbr.rel (0) target = $region37
    $region36: #{tpu_custom_call.1} parent=1 // pred_region
      %152 = vsyncadd [#allocation4], 0
      %s154 = sshll.u32 [#allocation8], 4
      %s155 = int_to_ptr.vmem [resolvable:$true] %s154
      %s156 = sshll.u32 %s5, 4
      %s157 = int_to_ptr.hbm [resolvable:$true] %s156
      %159 = dma.vmem_to_hbm [thread:$0]  %s155, 128, %s157, [#allocation4]
    $region37: #{tpu_custom_call.1} parent=1 // pred_fallthru
      _
    // Predicated region
    $region38: #{tpu_custom_call.1} parent=1 // pred_check
      _
    $region39: #{tpu_custom_call.1} parent=1 // pred_check_branch
      %161 = sbr.rel (0) target = $region41
    $region40: #{tpu_custom_call.1} parent=1 // pred_region
      %163 = dma.done [#allocation4], 128
    $region41: #{tpu_custom_call.1} parent=1 // pred_fallthru
      _
    %164 = vsyncpa [#allocation3], 1
    %165 = vsyncpa [#allocation6], 1
    %166 = vsyncpa [#allocation4], 1

// kernel: tpu_custom_call.1
$region0: #{tpu_custom_call.1}
  #allocation0 [shape = 'u32[]', space=smem, size = 0x4, offset = 0x4, fixed_abs, tag = 'smem constant byte address 0x4 - core index']
  #allocation1 [shape = 'u32[72,128]{1,0:T(1,128)}', space=vmem, size = 0x9000, scoped, tag = 'internal scratch']
  %s0 = inlined_call_operand.hbm [shape: f32[8,128], index: 0, kind: input, shape index: {}]
  %s1 = inlined_call_operand.hbm [shape: f32[128,128], index: 1, kind: input, shape index: {}]
  %s2 = inlined_call_operand.vmem [shape: f32[1,128], index: 2, kind: input, shape index: {}]
  %s3 = inlined_call_operand.hbm [shape: f32[128,128], index: 3, kind: input, shape index: {}]
  %s4 = inlined_call_operand.vmem [shape: f32[1,128], index: 4, kind: input, shape index: {}]
  %s5 = inlined_call_operand.hbm [shape: f32[8,128], index: 5, kind: output, shape index: {}]
  %s6 = sld [smem:[#allocation0]]
  $region42: #{tpu_custom_call.1} parent=0
    _
  %s8 = ssub.s32 1, %s6
  %s9 = scalar_select 0, %s8, %s6
  $region1: #{tpu_custom_call.1} parent=0
    #allocation2 [shape = 'u8[4096]{0}', space=vmem, size = 0x1000, scoped, tag = 'input window, operand 0, single buffered']
    #allocation3 [shape = 's32[1]{0}', space=sflag, size = 0x4, scoped, tag = 'scoped memory for tpu_custom_call.1']
    #allocation4 [shape = 's32[1]{0}', space=sflag, size = 0x4, scoped, tag = 'scoped memory for tpu_custom_call.1']
    #allocation5 [shape = 'u8[65536]{0}', space=vmem, size = 0x10000, scoped, tag = 'input window, operand 1, single buffered']
    #allocation6 [shape = 's32[1]{0}', space=sflag, size = 0x4, scoped, tag = 'scoped memory for tpu_custom_call.1']
    #allocation7 [shape = 'u8[65536]{0}', space=vmem, size = 0x10000, scoped, tag = 'input window, operand 3, single buffered']
    #allocation8 [shape = 'u8[4096]{0}', space=vmem, size = 0x1000, scoped, tag = 'output window, operand 0, single buffered']
    %10 = vsyncpa [#allocation3], 0
    %11 = vsyncpa [#allocation6], 0
    %12 = vsyncpa [#allocation4], 0
    // Predicated region
    $region2: #{tpu_custom_call.1} parent=1 // pred_check
      _
    $region3: #{tpu_custom_call.1} parent=1 // pred_check_branch
      %14 = sbr.rel (0) target = $region5
    $region4: #{tpu_custom_call.1} parent=1 // pred_region
      %16 = vsyncadd [#allocation3], 0
      %s18 = sshll.u32 %s0, 4
      %s19 = int_to_ptr.hbm [resolvable:$true] %s18
      %s20 = sshll.u32 [#allocation2], 4
      %s21 = int_to_ptr.vmem [resolvable:$true] %s20
      %23 = dma.hbm_to_vmem [thread:$0]  %s19, 128, %s21, [#allocation3]
    $region5: #{tpu_custom_call.1} parent=1 // pred_fallthru
      _
    // Predicated region
    $region6: #{tpu_custom_call.1} parent=1 // pred_check
      _
    $region7: #{tpu_custom_call.1} parent=1 // pred_check_branch
      %25 = sbr.rel (0) target = $region9
    $region8: #{tpu_custom_call.1} parent=1 // pred_region
      %27 = vsyncadd [#allocation6], 0
      %s28 = sshll.u32 %s1, 4
      %s29 = int_to_ptr.hbm [resolvable:$true] %s28
      %s30 = sshll.u32 [#allocation5], 4
      %s31 = int_to_ptr.vmem [resolvable:$true] %s30
      %36 = dma.hbm_to_vmem [thread:$0]  %s29, 2048, %s31, [#allocation6], 128, 128, 8
    $region9: #{tpu_custom_call.1} parent=1 // pred_fallthru
      _
    // Predicated region
    $region10: #{tpu_custom_call.1} parent=1 // pred_check
      _
    $region11: #{tpu_custom_call.1} parent=1 // pred_check_branch
      %38 = sbr.rel (0) target = $region13
    $region12: #{tpu_custom_call.1} parent=1 // pred_region
      _
    $region13: #{tpu_custom_call.1} parent=1 // pred_fallthru
      _
    // Predicated region
    $region14: #{tpu_custom_call.1} parent=1 // pred_check
      _
    $region15: #{tpu_custom_call.1} parent=1 // pred_check_branch
      %40 = sbr.rel (0) target = $region17
    $region16: #{tpu_custom_call.1} parent=1 // pred_region
      %42 = vsyncadd [#allocation6], 0
      %s43 = sshll.u32 %s3, 4
      %s44 = int_to_ptr.hbm [resolvable:$true] %s43
      %s45 = sshll.u32 [#allocation7], 4
      %s46 = int_to_ptr.vmem [resolvable:$true] %s45
      %51 = dma.hbm_to_vmem [thread:$0]  %s44, 2048, %s46, [#allocation6], 128, 128, 8
    $region17: #{tpu_custom_call.1} parent=1 // pred_fallthru
      _
    // Predicated region
    $region18: #{tpu_custom_call.1} parent=1 // pred_check
      _
    $region19: #{tpu_custom_call.1} parent=1 // pred_check_branch
      %53 = sbr.rel (0) target = $region21
    $region20: #{tpu_custom_call.1} parent=1 // pred_region
      _
    $region21: #{tpu_custom_call.1} parent=1 // pred_fallthru
      _
    // Predicated region
    $region22: #{tpu_custom_call.1} parent=1 // pred_check
      _
    $region23: #{tpu_custom_call.1} parent=1 // pred_check_branch
      %55 = sbr.rel (0) target = $region25
    $region24: #{tpu_custom_call.1} parent=1 // pred_region
      %57 = dma.done [#allocation3], 128
    $region25: #{tpu_custom_call.1} parent=1 // pred_fallthru
      _
    // Predicated region
    $region26: #{tpu_custom_call.1} parent=1 // pred_check
      _
    $region27: #{tpu_custom_call.1} parent=1 // pred_check_branch
      %59 = sbr.rel (0) target = $region29
    $region28: #{tpu_custom_call.1} parent=1 // pred_region
      %61 = dma.done [#allocation6], 2048
    $region29: #{tpu_custom_call.1} parent=1 // pred_fallthru
      _
    // Predicated region
    $region30: #{tpu_custom_call.1} parent=1 // pred_check
      _
    $region31: #{tpu_custom_call.1} parent=1 // pred_check_branch
      %63 = sbr.rel (0) target = $region33
    $region32: #{tpu_custom_call.1} parent=1 // pred_region
      %65 = dma.done [#allocation6], 2048
    $region33: #{tpu_custom_call.1} parent=1 // pred_fallthru
      _
    %v66 = vld [vmem:[#allocation2] sm:$0xff]
    %v67 = vld [vmem:[#allocation5] sm:$0xff]
    %v68 = vld [vmem:[#allocation5 + $0x8] sm:$0xff]
    %v69 = vld [vmem:[#allocation5 + $0x10] sm:$0xff]
    %v70 = vld [vmem:[#allocation5 + $0x18] sm:$0xff]
    %v71 = vld [vmem:[#allocation5 + $0x20] sm:$0xff]
    %v72 = vld [vmem:[#allocation5 + $0x28] sm:$0xff]
    %v73 = vld [vmem:[#allocation5 + $0x30] sm:$0xff]
    %v74 = vld [vmem:[#allocation5 + $0x38] sm:$0xff]
    %v75 = vld [vmem:[#allocation5 + $0x40] sm:$0xff]
    %v76 = vld [vmem:[#allocation5 + $0x48] sm:$0xff]
    %v77 = vld [vmem:[#allocation5 + $0x50] sm:$0xff]
    %v78 = vld [vmem:[#allocation5 + $0x58] sm:$0xff]
    %v79 = vld [vmem:[#allocation5 + $0x60] sm:$0xff]
    %v80 = vld [vmem:[#allocation5 + $0x68] sm:$0xff]
    %v81 = vld [vmem:[#allocation5 + $0x70] sm:$0xff]
    %v82 = vld [vmem:[#allocation5 + $0x78] sm:$0xff]
    %v83 = vld [vmem:[%s2] sm:$0x1]
    %v85 = vperm.slane %v83, 0
    %87 = vmatpush.msra.mxu0 %v82
    %88 = vmatpush.msra.mxu0 %v81
    %89 = vmatpush.msra.mxu0 %v80
    %90 = vmatpush.msra.mxu0 %v79
    %91 = vmatpush.msra.mxu0 %v78
    %92 = vmatpush.msra.mxu0 %v77
    %93 = vmatpush.msra.mxu0 %v76
    %94 = vmatpush.msra.mxu0 %v75
    %95 = vmatpush.msra.mxu0 %v74
    %96 = vmatpush.msra.mxu0 %v73
    %97 = vmatpush.msra.mxu0 %v72
    %98 = vmatpush.msra.mxu0 %v71
    %99 = vmatpush.msra.mxu0 %v70
    %100 = vmatpush.msra.mxu0 %v69
    %101 = vmatpush.msra.mxu0 %v68
    %102 = vmatpush.msra.mxu0 %v67
    %103 = vmatmul.f32.gmra.mxu0 %v66
    %v104 = vpop.f32.mrf.mxu0
    %v105 = vadd.f32 %v85, %v104
    %106 = vdwg.mxu0
    %v107 = vmax.f32 %v105, 0.0
    %v108 = vld [vmem:[#allocation7] sm:$0xff]
    %v109 = vld [vmem:[#allocation7 + $0x8] sm:$0xff]
    %v110 = vld [vmem:[#allocation7 + $0x10] sm:$0xff]
    %v111 = vld [vmem:[#allocation7 + $0x18] sm:$0xff]
    %v112 = vld [vmem:[#allocation7 + $0x20] sm:$0xff]
    %v113 = vld [vmem:[#allocation7 + $0x28] sm:$0xff]
    %v114 = vld [vmem:[#allocation7 + $0x30] sm:$0xff]
    %v115 = vld [vmem:[#allocation7 + $0x38] sm:$0xff]
    %v116 = vld [vmem:[#allocation7 + $0x40] sm:$0xff]
    %v117 = vld [vmem:[#allocation7 + $0x48] sm:$0xff]
    %v118 = vld [vmem:[#allocation7 + $0x50] sm:$0xff]
    %v119 = vld [vmem:[#allocation7 + $0x58] sm:$0xff]
    %v120 = vld [vmem:[#allocation7 + $0x60] sm:$0xff]
    %v121 = vld [vmem:[#allocation7 + $0x68] sm:$0xff]
    %v122 = vld [vmem:[#allocation7 + $0x70] sm:$0xff]
    %v123 = vld [vmem:[#allocation7 + $0x78] sm:$0xff]
    %v124 = vld [vmem:[%s4] sm:$0x1]
    %v126 = vperm.slane %v124, 0
    %128 = vmatpush.msra.mxu0 %v123
    %129 = vmatpush.msra.mxu0 %v122
    %130 = vmatpush.msra.mxu0 %v121
    %131 = vmatpush.msra.mxu0 %v120
    %132 = vmatpush.msra.mxu0 %v119
    %133 = vmatpush.msra.mxu0 %v118
    %134 = vmatpush.msra.mxu0 %v117
    %135 = vmatpush.msra.mxu0 %v116
    %136 = vmatpush.msra.mxu0 %v115
    %137 = vmatpush.msra.mxu0 %v114
    %138 = vmatpush.msra.mxu0 %v113
    %139 = vmatpush.msra.mxu0 %v112
    %140 = vmatpush.msra.mxu0 %v111
    %141 = vmatpush.msra.mxu0 %v110
    %142 = vmatpush.msra.mxu0 %v109
    %143 = vmatpush.msra.mxu0 %v108
    %144 = vmatmul.f32.gmra.mxu0 %v107
    %v145 = vpop.f32.mrf.mxu0
    %v146 = vadd.f32 %v126, %v145
    %147 = vdwg.mxu0
    %148 = vst [vmem:[#allocation8] sm:$0xff] %v146
    // Predicated region
    $region34: #{tpu_custom_call.1} parent=1 // pred_check
      _
    $region35: #{tpu_custom_call.1} parent=1 // pred_check_branch
      %150 = sbr.rel (0) target = $region37
    $region36: #{tpu_custom_call.1} parent=1 // pred_region
      %152 = vsyncadd [#allocation4], 0
      %s154 = sshll.u32 [#allocation8], 4
      %s155 = int_to_ptr.vmem [resolvable:$true] %s154
      %s156 = sshll.u32 %s5, 4
      %s157 = int_to_ptr.hbm [resolvable:$true] %s156
      %159 = dma.vmem_to_hbm [thread:$0]  %s155, 128, %s157, [#allocation4]
    $region37: #{tpu_custom_call.1} parent=1 // pred_fallthru
      _
    // Predicated region
    $region38: #{tpu_custom_call.1} parent=1 // pred_check
      _
    $region39: #{tpu_custom_call.1} parent=1 // pred_check_branch
      %161 = sbr.rel (0) target = $region41
    $region40: #{tpu_custom_call.1} parent=1 // pred_region
      %163 = dma.done [#allocation4], 128
    $region41: #{tpu_custom_call.1} parent=1 // pred_fallthru
      _
    %164 = vsyncpa [#allocation3], 1
    %165 = vsyncpa [#allocation6], 1
    %166 = vsyncpa [#allocation4], 1

</llo_original>
